<compile_context>
chip_gen: v7x
topology: tpu7x:2x2x1
jax: 0.10.0
libtpu: 0.0.40
codegen_flags: <defaults>
</compile_context>

<pallas_src>
import functools
import numpy as np
import jax
import jax.numpy as jnp
from jax import lax
from jax.experimental import pallas as pl
from jax.experimental.pallas import tpu as pltpu

PAD, SHIFT, REDUCE = 0, 1, 2
LANE = 128
RC = 8  # row chunk for the gate/cell compute (one sublane group)


def _round_up(x, m):
    return (x + m - 1) // m * m


def _vmem_limit(est_bytes):
    # Never below the default scoped limit, never above v7x physical VMEM.
    return int(min(64 << 20, max(32 << 20, 2 * int(est_bytes))))


# ---------------------------------------------------------------------------
# Kernel 1: word projection  (Linear fused with eval-mode BN, BN pre-folded,
#           bf16 MXU operands, f32 accumulate, output already in arena layout)
# ---------------------------------------------------------------------------
def _word_kernel(x_ref, w_ref, b_ref, o_ref):
    x = x_ref[...].astype(jnp.bfloat16)
    o_ref[...] = jnp.dot(x, w_ref[...],
                         preferred_element_type=jnp.float32) + b_ref[...]


def _choose_tile_m(mp):
    target = max(8, mp // 2)  # >=2 grid programs when possible (v7x megacore)
    for cand in (512, 256, 128, 64, 32, 16, 8):
        if cand <= target and mp % cand == 0:
            return cand
    return mp


def word_projection(x_pad, w_bf16, b_pad):
    """x_pad: (NL_pad, Ep) f32   w_bf16: (Ep, 2*Hp) bf16   b_pad: (1, 2*Hp) f32."""
    Mp, Ep = x_pad.shape
    H2p = w_bf16.shape[1]
    tm = _choose_tile_m(Mp)
    est = 2 * (tm * Ep * 4 + tm * H2p * 4) + 2 * (Ep * H2p * 2 + H2p * 4)
    return pl.pallas_call(
        _word_kernel,
        out_shape=jax.ShapeDtypeStruct((Mp, H2p), jnp.float32),
        grid_spec=pltpu.PrefetchScalarGridSpec(
            num_scalar_prefetch=0,
            grid=(Mp // tm,),
            in_specs=[
                pl.BlockSpec((tm, Ep), lambda i: (i, 0)),     # row tiles, pipelined
                pl.BlockSpec((Ep, H2p), lambda i: (0, 0)),    # weight resident
                pl.BlockSpec((1, H2p), lambda i: (0, 0)),
            ],
            out_specs=pl.BlockSpec((tm, H2p), lambda i: (i, 0)),
        ),
        compiler_params=pltpu.CompilerParams(
            dimension_semantics=("parallel",),
            vmem_limit_bytes=_vmem_limit(est)),
    )(x_pad, w_bf16, b_pad)


# ---------------------------------------------------------------------------
# Kernel 2: whole TreeLSTM reduce schedule in one pallas_call, single grid step
# ---------------------------------------------------------------------------
def _tree_kernel(lidx_ref, ridx_ref, root_ref,           # SMEM scalar prefetch
                 leaf_hbm, w_ref, b_ref,                  # inputs (leaf stays in HBM)
                 out_ref,                                 # output (B_pad, Hp)
                 arena, lr_buf, sem,                      # VMEM scratch + DMA sem
                 *, NL_pad, Hp, B_pad, T_sched):
    # Seed leaf rows of the arena directly from HBM (no VMEM->VMEM copy, no
    # duplicate resident leaf buffer).
    cp = pltpu.make_async_copy(leaf_hbm, arena.at[0:NL_pad, :], sem.at[0])
    cp.start()
    bias = b_ref[...]                       # (1, 5*Hp), loop-invariant
    cp.wait()

    @pl.loop(0, T_sched)
    def _step(t):
        base = t * B_pad
        # Gather children: one (1, 2*Hp) row copy per child ([h|c] merged rows).
        for s in range(B_pad):
            li = lidx_ref[base + s]
            ri = ridx_ref[base + s]
            lr_buf[s:s + 1, 0:2 * Hp] = arena[pl.ds(li, 1), :]
            lr_buf[s:s + 1, 2 * Hp:4 * Hp] = arena[pl.ds(ri, 1), :]

        # Fused gate matmul + cell update in 8-row chunks (bounded vreg pressure);
        # scatter is a contiguous, sublane-aligned unmasked block store.
        for r0 in range(0, B_pad, RC):
            lr = lr_buf[r0:r0 + RC, :]                      # [h_l | c_l | h_r | c_r]
            gates = jnp.dot(lr, w_ref[...],
                            preferred_element_type=jnp.float32) + bias
            i_g = jax.nn.sigmoid(gates[:, 0 * Hp:1 * Hp])
            f_l = jax.nn.sigmoid(gates[:, 1 * Hp:2 * Hp])
            f_r = jax.nn.sigmoid(gates[:, 2 * Hp:3 * Hp])
            o_g = jax.nn.sigmoid(gates[:, 3 * Hp:4 * Hp])
            g_g = jnp.tanh(gates[:, 4 * Hp:5 * Hp])
            c_new = f_l * lr[:, 1 * Hp:2 * Hp] + f_r * lr[:, 3 * Hp:4 * Hp] + i_g * g_g
            h_new = o_g * jnp.tanh(c_new)
            rows = pl.multiple_of(NL_pad + t * B_pad + r0, 8)
            arena[pl.ds(rows, RC), 0:Hp] = h_new
            arena[pl.ds(rows, RC), Hp:2 * Hp] = c_new

    # Emit roots (B_pad single-row gathers once; negligible tail).
    for b in range(B_pad):
        out_ref[b:b + 1, :] = arena[pl.ds(root_ref[b], 1), 0:Hp]


def tree_reduce(leaf_arena, red_w, red_b, lidx, ridx, roots,
                *, NL_pad, Hp, B_pad, T_sched, arena_rows):
    kernel = functools.partial(_tree_kernel, NL_pad=NL_pad, Hp=Hp,
                               B_pad=B_pad, T_sched=T_sched)
    cmap = lambda i, lid, rid, rts: (0, 0)   # index_maps also get the prefetch refs
    est = (arena_rows * 2 * Hp * 4 + B_pad * 4 * Hp * 4
           + 2 * (4 * Hp * 5 * Hp * 4 + 5 * Hp * 4) + 2 * (B_pad * Hp * 4))
    return pl.pallas_call(
        kernel,
        out_shape=jax.ShapeDtypeStruct((B_pad, Hp), jnp.float32),
        grid_spec=pltpu.PrefetchScalarGridSpec(
            num_scalar_prefetch=3,
            grid=(1,),
            in_specs=[
                pl.BlockSpec(memory_space=pl.ANY),           # leaf arena (HBM, manual DMA)
                pl.BlockSpec((4 * Hp, 5 * Hp), cmap),        # fused Wl/Wr (resident, f32)
                pl.BlockSpec((1, 5 * Hp), cmap),
            ],
            out_specs=pl.BlockSpec((B_pad, Hp), cmap),
            scratch_shapes=[
                pltpu.VMEM((arena_rows, 2 * Hp), jnp.float32),   # merged [h|c] arena
                pltpu.VMEM((B_pad, 4 * Hp), jnp.float32),        # [h_l|c_l|h_r|c_r] gather
                pltpu.SemaphoreType.DMA((1,)),
            ],
        ),
        compiler_params=pltpu.CompilerParams(
            dimension_semantics=("arbitrary",),
            vmem_limit_bytes=_vmem_limit(est)),
    )(lidx, ridx, roots, leaf_arena, red_w, red_b)


# ---------------------------------------------------------------------------
# Host-side schedule precomputation (transitions / num_ops are static numpy)
# ---------------------------------------------------------------------------
def build_schedule(transitions, num_ops, B, L, NL_pad):
    """Flat gather tables over a node arena.
    Rows 0..B*L-1 = leaves; step t, slot s of the schedule writes row
    NL_pad + t*B_pad + s (contiguous per-step blocks -> unmasked block scatter)."""
    B_pad = max(8, _round_up(B, 8))
    buffers = [list(range(b * L, (b + 1) * L)) for b in range(B)]
    stacks = [[] for _ in range(B)]
    T = transitions.shape[1]
    steps = []
    for t in range(T):
        reduces = []
        for b in range(B):
            if int(num_ops[b]) - t <= 0:
                continue
            act = int(transitions[b, t])
            if act == REDUCE:
                r = stacks[b].pop()
                l = stacks[b].pop()
                reduces.append((b, l, r))
            elif act == SHIFT:
                stacks[b].append(buffers[b].pop(0))
        if reduces:
            step_id = len(steps)
            for slot, (b, _, _) in enumerate(reduces):
                stacks[b].append(NL_pad + step_id * B_pad + slot)
            steps.append(reduces)
    for b in range(B):
        assert len(stacks[b]) == 1, "Stack size should be 1"

    roots = np.zeros((B_pad,), np.int32)
    for b in range(B):
        roots[b] = stacks[b][-1]

    T_sched = len(steps)
    rows = max(T_sched, 1)
    lidx = np.zeros((rows, B_pad), np.int32)   # inactive slots gather row 0 (harmless)
    ridx = np.zeros((rows, B_pad), np.int32)
    for s_id, reduces in enumerate(steps):
        for slot, (b, l, r) in enumerate(reduces):
            lidx[s_id, slot] = l
            ridx[s_id, slot] = r
    arena_rows = NL_pad + rows * B_pad          # multiple of 8 by construction
    return lidx.reshape(-1), ridx.reshape(-1), roots, T_sched, B_pad, arena_rows


# ---------------------------------------------------------------------------
# Parameters (BN folded, lane-padded, fused reduce weights)
# ---------------------------------------------------------------------------
class SPINNParams:
    def __init__(self, key, embed_dim, hidden_size):
        self.embed_dim = E = embed_dim
        self.hidden_size = H = hidden_size
        self.Ep = Ep = _round_up(E, LANE)
        self.Hp = Hp = _round_up(H, LANE)
        k1, k2, k3, k4, k5 = jax.random.split(key, 5)

        # nn.Linear default init: U(-1/sqrt(fan_in), 1/sqrt(fan_in))
        lim_w = 1.0 / np.sqrt(E)
        self.word_w = jax.random.uniform(k1, (E, 2 * H), jnp.float32, -lim_w, lim_w)
        self.word_b = jax.random.uniform(k2, (1, 2 * H), jnp.float32, -lim_w, lim_w)
        # BatchNorm1d(2H) defaults (eval mode): gamma=1, beta=0, mean=0, var=1
        eps = 1e-5
        gamma = jnp.ones((1, 2 * H), jnp.float32)
        beta = jnp.zeros((1, 2 * H), jnp.float32)
        running_mean = jnp.zeros((1, 2 * H), jnp.float32)
        running_var = jnp.ones((1, 2 * H), jnp.float32)
        self.bn_scale = gamma / jnp.sqrt(running_var + eps)
        self.bn_shift = beta - running_mean * self.bn_scale
        # Reduce: two Linear(H -> 5H), shared bias.  Gate order: i, f_l, f_r, o, g.
        # TODO(synk): gate order assumed (canonical SPINN Reduce); the Reduce module
        #             source was not shipped with the reference.
        lim_r = 1.0 / np.sqrt(H)
        self.red_wl = jax.random.uniform(k3, (H, 5 * H), jnp.float32, -lim_r, lim_r)
        self.red_wr = jax.random.uniform(k4, (H, 5 * H), jnp.float32, -lim_r, lim_r)
        self.red_b = jax.random.uniform(k5, (1, 5 * H), jnp.float32, -lim_r, lim_r)

        # ---- fused / padded device parameters ----
        w_f = self.word_w * self.bn_scale                     # fold eval-mode BN
        b_f = self.word_b * self.bn_scale + self.bn_shift
        word_w_pad = jnp.zeros((Ep, 2 * Hp), jnp.float32)
        word_w_pad = word_w_pad.at[:E, 0:H].set(w_f[:, 0:H])             # h half
        word_w_pad = word_w_pad.at[:E, Hp:Hp + H].set(w_f[:, H:2 * H])   # c half
        self.word_w_bf16 = word_w_pad.astype(jnp.bfloat16)               # bf16 MXU operand
        word_b_pad = jnp.zeros((1, 2 * Hp), jnp.float32)
        word_b_pad = word_b_pad.at[:, 0:H].set(b_f[:, 0:H])
        word_b_pad = word_b_pad.at[:, Hp:Hp + H].set(b_f[:, H:2 * H])
        self.word_b_pad = word_b_pad

        # Fused reduce weights for merged-[h|c] gather rows:
        #   gates = [h_l | c_l | h_r | c_r] @ W + b   (zero rows at the c positions)
        red_w_pad = jnp.zeros((4 * Hp, 5 * Hp), jnp.float32)
        red_b_pad = jnp.zeros((1, 5 * Hp), jnp.float32)
        for g in range(5):
            red_w_pad = red_w_pad.at[0:H, g * Hp:g * Hp + H].set(
                self.red_wl[:, g * H:(g + 1) * H])
            red_w_pad = red_w_pad.at[2 * Hp:2 * Hp + H, g * Hp:g * Hp + H].set(
                self.red_wr[:, g * H:(g + 1) * H])
            red_b_pad = red_b_pad.at[:, g * Hp:g * Hp + H].set(
                self.red_b[:, g * H:(g + 1) * H])
        self.red_w_pad = red_w_pad     # kept f32: recurrent path stays exact
        self.red_b_pad = red_b_pad


# ---------------------------------------------------------------------------
# Forward passes
# ---------------------------------------------------------------------------
def spinn_forward(params, sentence, transitions, num_ops):
    """Pallas path: exactly 2 pallas_call launches for the whole forward."""
    B, L, E = sentence.shape
    H, Hp, Ep = params.hidden_size, params.Hp, params.Ep
    NL = B * L
    NL_pad = _round_up(NL, 8)

    x = sentence.reshape(NL, E)
    x_pad = jnp.zeros((NL_pad, Ep), jnp.float32).at[:NL, :E].set(x)
    # Leaves come out already in arena row layout (row = leaf id, cols = [h|c]).
    leaf = word_projection(x_pad, params.word_w_bf16, params.word_b_pad)

    lidx, ridx, roots, T_sched, B_pad, arena_rows = build_schedule(
        np.asarray(transitions), np.asarray(num_ops), B, L, NL_pad)

    if T_sched == 0:   # no reduces at all (L == 1): roots are leaves
        return leaf[jnp.asarray(roots[:B]), :H], None, None

    out = tree_reduce(
        leaf, params.red_w_pad, params.red_b_pad,
        jnp.asarray(lidx), jnp.asarray(ridx), jnp.asarray(roots),
        NL_pad=NL_pad, Hp=Hp, B_pad=B_pad, T_sched=T_sched, arena_rows=arena_rows)
    return out[:B, :H], None, None


def spinn_reference(params, sentence, transitions, num_ops,
                    match_kernel_quantization=False):
    """Pure-JAX reference (host-driven loop, checking only).
    match_kernel_quantization=True reproduces the kernel's bf16 word-projection
    operands exactly, isolating kernel correctness from quantization drift."""
    B, L, E = sentence.shape
    H = params.hidden_size
    hi = lax.Precision.HIGHEST
    x = sentence.reshape(B * L, E)
    if match_kernel_quantization:
        w_q = (params.word_w * params.bn_scale).astype(jnp.bfloat16).astype(jnp.float32)
        b_q = params.word_b * params.bn_scale + params.bn_shift
        x_q = x.astype(jnp.bfloat16).astype(jnp.float32)
        out = jnp.dot(x_q, w_q, precision=hi) + b_q
    else:
        out = jnp.dot(x, params.word_w, precision=hi) + params.word_b
        out = out * params.bn_scale + params.bn_shift
    out = out.reshape(B, L, 2 * H)
    h_sent, c_sent = out[:, :, :H], out[:, :, H:]
    buffers = [[(h_sent[b, t:t + 1, :], c_sent[b, t:t + 1, :]) for t in range(L)]
               for b in range(B)]
    stacks = [[] for _ in range(B)]
    T = transitions.shape[1]
    for t in range(T):
        ids, lh, lc, rh, rc = [], [], [], [], []
        for b in range(B):
            if int(num_ops[b]) - t <= 0:
                continue
            act = int(transitions[b, t])
            if act == REDUCE:
                r = stacks[b].pop(); l = stacks[b].pop()
                ids.append(b)
                lh.append(l[0]); lc.append(l[1]); rh.append(r[0]); rc.append(r[1])
            elif act == SHIFT:
                stacks[b].append(buffers[b].pop(0))
        if ids:
            hl = jnp.concatenate(lh, 0); cl = jnp.concatenate(lc, 0)
            hr = jnp.concatenate(rh, 0); cr = jnp.concatenate(rc, 0)
            gates = (jnp.dot(hl, params.red_wl, precision=hi)
                     + jnp.dot(hr, params.red_wr, precision=hi) + params.red_b)
            i_g = jax.nn.sigmoid(gates[:, 0 * H:1 * H])
            f_l = jax.nn.sigmoid(gates[:, 1 * H:2 * H])
            f_r = jax.nn.sigmoid(gates[:, 2 * H:3 * H])
            o_g = jax.nn.sigmoid(gates[:, 3 * H:4 * H])
            g_g = jnp.tanh(gates[:, 4 * H:5 * H])
            c = f_l * cl + f_r * cr + i_g * g_g
            h = o_g * jnp.tanh(c)
            for i, b in enumerate(ids):
                stacks[b].append((h[i:i + 1, :], c[i:i + 1, :]))
    for b in range(B):
        assert len(stacks[b]) == 1, "Stack size should be 1"
    return jnp.concatenate([stacks[b][-1][0] for b in range(B)], 0), None, None


def make_transitions(L, style):
    """Valid SHIFT/REDUCE sequences of length 2L-1."""
    if style == "left":
        seq = [SHIFT, SHIFT]
        for _ in range(L - 2):
            seq += [REDUCE, SHIFT]
        seq += [REDUCE]
    else:
        seq = [SHIFT] * L + [REDUCE] * (L - 1)
    return seq


if __name__ == "__main__":
    B, L, E, H = 2, 8, 32, 32
    key = jax.random.PRNGKey(0)
    k_param, k_sent = jax.random.split(key)

    params = SPINNParams(k_param, embed_dim=E, hidden_size=H)
    sentence = jax.random.normal(k_sent, (B, L, E), jnp.float32)

    transitions = np.stack([make_transitions(L, "left"),
                            make_transitions(L, "right")], axis=0).astype(np.int32)
    num_ops = np.array([2 * L - 1, 2 * L - 1], dtype=np.int32)

    out, _, _ = spinn_forward(params, sentence, transitions, num_ops)
    out = jax.block_until_ready(out)
    assert out.shape == (B, H)

    # Tight check: same bf16 quantization of the word projection as the kernel.
    ref_q, _, _ = spinn_reference(params, sentence, transitions, num_ops,
                                  match_kernel_quantization=True)
    ref_q = jax.block_until_ready(ref_q)
    np.testing.assert_allclose(np.asarray(out), np.asarray(ref_q),
                               rtol=2e-3, atol=2e-3)

    # Loose check: exact f32 module math (bounds the bf16 word-projection drift).
    ref_f, _, _ = spinn_reference(params, sentence, transitions, num_ops,
                                  match_kernel_quantization=False)
    ref_f = jax.block_until_ready(ref_f)
    np.testing.assert_allclose(np.asarray(out), np.asarray(ref_f),
                               rtol=2e-2, atol=2e-2)

    print("KERNEL_OK")
</pallas_src>

<mosaic_0001>
module attributes {stable_mosaic.version = 11 : i64} {
  func.func @_word_kernel(%arg0: i32, %arg1: memref<8x128xf32, #tpu.memory_space<vmem>>, %arg2: memref<128x256xbf16, #tpu.memory_space<vmem>>, %arg3: memref<1x256xf32, #tpu.memory_space<vmem>>, %arg4: memref<8x256xf32, #tpu.memory_space<vmem>>) attributes {dimension_semantics = [#tpu.dimension_semantics<parallel>], iteration_bounds = array<i64: 2>, scalar_prefetch = 0 : i64, scratch_operands = 0 : i64, tpu.core_type = #tpu.core_type<tc>, window_params = [{transform_indices = @transform_0, window_bounds = array<i64: 8, 128>}, {pipeline_mode = #tpu.pipeline_mode<synchronous>, transform_indices = @transform_1, window_bounds = array<i64: 128, 256>}, {pipeline_mode = #tpu.pipeline_mode<synchronous>, transform_indices = @transform_2, window_bounds = array<i64: 1, 256>}, {transform_indices = @transform_3, window_bounds = array<i64: 8, 256>}]} {
    %c0 = arith.constant 0 : index
    %c0_0 = arith.constant 0 : index
    %0 = vector.load %arg1[%c0, %c0_0] : memref<8x128xf32, #tpu.memory_space<vmem>>, vector<8x128xf32>
    %1 = arith.truncf %0 : vector<8x128xf32> to vector<8x128xbf16>
    %c0_1 = arith.constant 0 : index
    %c0_2 = arith.constant 0 : index
    %2 = vector.load %arg2[%c0_1, %c0_2] : memref<128x256xbf16, #tpu.memory_space<vmem>>, vector<128x256xbf16>
    %cst = arith.constant dense<0.000000e+00> : vector<8x256xf32>
    %3 = tpu.matmul %1, %2, %cst {dimension_numbers = #tpu.dot_dimension_numbers<[1], [0], [0], [1], [0, 0, 1, 1], [], []>} : vector<8x128xbf16>, vector<128x256xbf16>, vector<8x256xf32> -> vector<8x256xf32>
    %c0_3 = arith.constant 0 : index
    %c0_4 = arith.constant 0 : index
    %4 = vector.load %arg3[%c0_3, %c0_4] : memref<1x256xf32, #tpu.memory_space<vmem>>, vector<1x256xf32>
    %5 = vector.broadcast %4 : vector<1x256xf32> to vector<8x256xf32>
    %6 = arith.addf %3, %5 : vector<8x256xf32>
    %c0_5 = arith.constant 0 : index
    %c0_6 = arith.constant 0 : index
    %7 = vector.load %arg4[%c0_5, %c0_6] : memref<8x256xf32, #tpu.memory_space<vmem>>, vector<8x256xf32>
    tpu.vector_store %arg4[%c0_5, %c0_6], %6 {strides = array<i32>} : memref<8x256xf32, #tpu.memory_space<vmem>>, vector<8x256xf32>,
    return
  }
  func.func @transform_0(%arg0: i32) -> (i32, i32) {
    %c0_i32 = arith.constant 0 : i32
    %c0_i32_0 = arith.constant 0 : i32
    return %arg0, %c0_i32 : i32, i32
  }
  func.func @transform_1(%arg0: i32) -> (i32, i32) {
    %c0_i32 = arith.constant 0 : i32
    %c0_i32_0 = arith.constant 0 : i32
    %c0_i32_1 = arith.constant 0 : i32
    return %c0_i32, %c0_i32_0 : i32, i32
  }
  func.func @transform_2(%arg0: i32) -> (i32, i32) {
    %c0_i32 = arith.constant 0 : i32
    %c0_i32_0 = arith.constant 0 : i32
    %c0_i32_1 = arith.constant 0 : i32
    return %c0_i32, %c0_i32_0 : i32, i32
  }
  func.func @transform_3(%arg0: i32) -> (i32, i32) {
    %c0_i32 = arith.constant 0 : i32
    %c0_i32_0 = arith.constant 0 : i32
    return %arg0, %c0_i32 : i32, i32
  }
}

</mosaic_0001>

<llo_original>
// kernel: tpu_custom_call.1
$region0: #{tpu_custom_call.1}
  #allocation0 [shape = 'u32[]', space=smem, size = 0x4, offset = 0x4, fixed_abs, tag = 'smem constant byte address 0x4 - core index']
  #allocation1 [shape = 'u32[144,128]{1,0:T(1,128)}', space=vmem, size = 0x12000, scoped, tag = 'internal scratch']
  %s0 = inlined_call_operand.hbm [shape: f32[16,128], index: 0, kind: input, shape index: {}]
  %s1 = inlined_call_operand.hbm [shape: bf16[128,256], index: 1, kind: input, shape index: {}]
  %s2 = inlined_call_operand.vmem [shape: f32[1,256], index: 2, kind: input, shape index: {}]
  %s3 = inlined_call_operand.hbm [shape: f32[16,256], index: 3, kind: output, shape index: {}]
  %s4 = sld [smem:[#allocation0]]
  $region53: #{tpu_custom_call.1} parent=0
    _
  %s6 = ssub.s32 1, %s4
  %s7 = scalar_select 0, %s6, %s4
  $region1: #{tpu_custom_call.1} parent=0
    #allocation2 [shape = 'u8[8192]{0}', space=vmem, size = 0x2000, scoped, tag = 'input window, operand 0']
    #allocation3 [shape = 's32[2]{0}', space=sflag, size = 0x8, scoped, tag = 'scoped memory for tpu_custom_call.1']
    #allocation4 [shape = 's32[2]{0}', space=sflag, size = 0x8, scoped, tag = 'scoped memory for tpu_custom_call.1']
    #allocation5 [shape = 'u8[65536]{0}', space=vmem, size = 0x10000, scoped, tag = 'input window, operand 1, single buffered']
    #allocation6 [shape = 's32[1]{0}', space=sflag, size = 0x4, scoped, tag = 'scoped memory for tpu_custom_call.1']
    #allocation7 [shape = 'u8[16384]{0}', space=vmem, size = 0x4000, scoped, tag = 'output window, operand 0']
    %8 = vsyncpa [#allocation3], 0
    %s9 = scalar_lea.sflag [#allocation3], 1
    %10 = vsyncpa %s9, 0
    %11 = vsyncpa [#allocation6], 0
    %12 = vsyncpa [#allocation4], 0
    %s13 = scalar_lea.sflag [#allocation4], 1
    %14 = vsyncpa %s13, 0
    loop: start=0, step=1, limit=4
    $region2: #{tpu_custom_call.1} parent=1 // loop_pre_header
      _
    $region3: #{tpu_custom_call.1} parent=1 // loop_header
      %s16 = sphi 0, %s20
      %p17 = scmp.ge.s32.totalorder %s16, 4
      %s26 = sphi 0, %s28
      %s29 = sphi 0, %s26
      %s30 = sphi 0, %s29
      %s46 = sphi 0, %s30
      %s50 = sphi 0, %s50
      %s52 = sphi 0, %s50
      %s53 = sphi 0, %s52
      %s67 = sphi 0, %s53
      %s71 = sphi 0, %s71
      %s73 = sphi 0, %s71
      %s74 = sphi 0, %s73
      %s88 = sphi 0, %s74
      %s94 = sphi 0, %s96
      %s97 = sphi 0, %s94
      %s98 = sphi 0, %s97
      %s114 = sphi 0, %s98
    $region4: #{tpu_custom_call.1} parent=1 // loop_header_branch
      %19 = sbr.rel (%p17) target = $region8
    $region5: #{tpu_custom_call.1} parent=1 // loop_body
      %s21 = ssub.s32 %s16, 1
      %s22 = ssub.s32 %s16, 2
      %s23 = sadd.s32 %s16, 1
      %s24 = ssub.s32 %s16, %s23
      %p25 = scmp.eq.s32.totalorder %s24, 0
      %s27 = sadd.s32 %s26, 1
      %s28 = scalar_select %p25, %s26, %s27
      %p31 = pneg %p25
      %p32 = scmp.eq.s32.totalorder %s16, 1
      %p33 = por %p31, %p32
      %p34 = scmp.ne.s32.totalorder %s26, %s29
      %p35 = scmp.eq.s32.totalorder %s16, 0
      %p36 = por %p34, %p35
      %p37 = scmp.ne.s32.totalorder %s26, %s29
      %p38 = scmp.eq.s32.totalorder %s21, 1
      %p39 = por %p37, %p38
      %p40 = scmp.ne.s32.totalorder %s29, %s30
      %p41 = scmp.eq.s32.totalorder %s21, 0
      %p42 = por %p40, %p41
      %p43 = scmp.ne.s32.totalorder %s29, %s30
      %p44 = scmp.eq.s32.totalorder %s22, 1
      %p45 = por %p43, %p44
      %p47 = scmp.ne.s32.totalorder %s30, %s46
      %p48 = scmp.eq.s32.totalorder %s22, 0
      %p49 = por %p47, %p48
      %s51 = sadd.s32 %s50, 1
      %p54 = scmp.eq.s32.totalorder %s16, 1
      %p55 = scmp.ne.s32.totalorder %s50, %s52
      %p56 = scmp.eq.s32.totalorder %s16, 0
      %p57 = por %p55, %p56
      %p58 = scmp.ne.s32.totalorder %s50, %s52
      %p59 = scmp.eq.s32.totalorder %s21, 1
      %p60 = por %p58, %p59
      %p61 = scmp.ne.s32.totalorder %s52, %s53
      %p62 = scmp.eq.s32.totalorder %s21, 0
      %p63 = por %p61, %p62
      %p64 = scmp.ne.s32.totalorder %s52, %s53
      %p65 = scmp.eq.s32.totalorder %s22, 1
      %p66 = por %p64, %p65
      %p68 = scmp.ne.s32.totalorder %s53, %s67
      %p69 = scmp.eq.s32.totalorder %s22, 0
      %p70 = por %p68, %p69
      %s72 = sadd.s32 %s71, 1
      %p75 = scmp.eq.s32.totalorder %s16, 1
      %p76 = scmp.ne.s32.totalorder %s71, %s73
      %p77 = scmp.eq.s32.totalorder %s16, 0
      %p78 = por %p76, %p77
      %p79 = scmp.ne.s32.totalorder %s71, %s73
      %p80 = scmp.eq.s32.totalorder %s21, 1
      %p81 = por %p79, %p80
      %p82 = scmp.ne.s32.totalorder %s73, %s74
      %p83 = scmp.eq.s32.totalorder %s21, 0
      %p84 = por %p82, %p83
      %p85 = scmp.ne.s32.totalorder %s73, %s74
      %p86 = scmp.eq.s32.totalorder %s22, 1
      %p87 = por %p85, %p86
      %p89 = scmp.ne.s32.totalorder %s74, %s88
      %p90 = scmp.eq.s32.totalorder %s22, 0
      %p91 = por %p89, %p90
      %s92 = ssub.s32 %s16, %s23
      %p93 = scmp.eq.s32.totalorder %s92, 0
      %s95 = sadd.s32 %s94, 1
      %s96 = scalar_select %p93, %s94, %s95
      %p99 = pneg %p93
      %p100 = scmp.eq.s32.totalorder %s16, 1
      %p101 = por %p99, %p100
      %p102 = scmp.ne.s32.totalorder %s94, %s97
      %p103 = scmp.eq.s32.totalorder %s16, 0
      %p104 = por %p102, %p103
      %p105 = scmp.ne.s32.totalorder %s94, %s97
      %p106 = scmp.eq.s32.totalorder %s21, 1
      %p107 = por %p105, %p106
      %p108 = scmp.ne.s32.totalorder %s97, %s98
      %p109 = scmp.eq.s32.totalorder %s21, 0
      %p110 = por %p108, %p109
      %p111 = scmp.ne.s32.totalorder %s97, %s98
      %p112 = scmp.eq.s32.totalorder %s22, 1
      %p113 = por %p111, %p112
      %p115 = scmp.ne.s32.totalorder %s98, %s114
      %p116 = scmp.eq.s32.totalorder %s22, 0
      %p117 = por %p115, %p116
      %p118 = scmp.le.s32.totalorder 1, %s16
      %p119 = scmp.lt.s32.totalorder %s16, 3
      %p120 = pnand %p118, %p119
      %p121 = pneg %p120
      // Predicated region
      $region9: #{tpu_custom_call.1} parent=5 // pred_check
        _
      $region10: #{tpu_custom_call.1} parent=5 // pred_check_branch
        %123 = sbr.rel (%p120) target = $region12
      $region11: #{tpu_custom_call.1} parent=5 // pred_region
        %s124 = ssub.s32 %s16, 1
        // Predicated region
        $region13: #{tpu_custom_call.1} parent=11 // pred_check
          %p125 = pneg %p63
        $region14: #{tpu_custom_call.1} parent=11 // pred_check_branch
          %127 = sbr.rel (%p125) target = $region16
        $region15: #{tpu_custom_call.1} parent=11 // pred_region
          %s129 = ssub.s32 2048, 2048
          %130 = vsyncadd [#allocation6], %s129
          %s131 = sshll.u32 [#allocation5], 4
          %s132 = int_to_ptr.vmem [resolvable:$true] %s131
          %137 = dma.hbm_to_vmem [thread:$0]  %s1, 2048, %s132, [#allocation6], 128, 128, 8
        $region16: #{tpu_custom_call.1} parent=11 // pred_fallthru
          _
        // Predicated region
        $region17: #{tpu_custom_call.1} parent=11 // pred_check
          %p138 = pneg %p84
        $region18: #{tpu_custom_call.1} parent=11 // pred_check_branch
          %140 = sbr.rel (%p138) target = $region20
        $region19: #{tpu_custom_call.1} parent=11 // pred_region
          _
        $region20: #{tpu_custom_call.1} parent=11 // pred_fallthru
          _
      $region12: #{tpu_custom_call.1} parent=5 // pred_fallthru
        _
      %p141 = scmp.lt.s32.totalorder %s16, 2
      // Predicated region
      $region21: #{tpu_custom_call.1} parent=5 // pred_check
        %p142 = pneg %p141
      $region22: #{tpu_custom_call.1} parent=5 // pred_check_branch
        %144 = sbr.rel (%p142) target = $region24
      $region23: #{tpu_custom_call.1} parent=5 // pred_region
        // Predicated region
        $region25: #{tpu_custom_call.1} parent=23 // pred_check
          %p145 = pneg %p36
        $region26: #{tpu_custom_call.1} parent=23 // pred_check_branch
          %147 = sbr.rel (%p145) target = $region28
        $region27: #{tpu_custom_call.1} parent=23 // pred_region
          %s148 = sand.u32 %s26, 1
          %s149 = scalar_lea.sflag [#allocation3], %s148
          %s150 = sand.u32 %s26, 1
          %s151 = smul.addr %s150, 8
          %s152 = scalar_lea.vmem [#allocation2], %s151
          %s154 = ssub.s32 128, 128
          %155 = vsyncadd %s149, %s154
          %s156 = smul.addr %s16, 128
          %s157 = scalar_lea.hbm %s0, %s156
          %s159 = sshll.u32 %s152, 4
          %s160 = int_to_ptr.vmem [resolvable:$true] %s159
          %162 = dma.hbm_to_vmem [thread:$0]  %s157, 128, %s160, %s149
        $region28: #{tpu_custom_call.1} parent=23 // pred_fallthru
          _
      $region24: #{tpu_custom_call.1} parent=5 // pred_fallthru
        _
      %p163 = scmp.le.s32.totalorder 1, %s16
      %p164 = scmp.lt.s32.totalorder %s16, 3
      %p165 = pnand %p163, %p164
      %p166 = pneg %p165
      // Predicated region
      $region29: #{tpu_custom_call.1} parent=5 // pred_check
        _
      $region30: #{tpu_custom_call.1} parent=5 // pred_check_branch
        %168 = sbr.rel (%p165) target = $region32
      $region31: #{tpu_custom_call.1} parent=5 // pred_region
        %s169 = ssub.s32 %s16, 1
        %s170 = sand.u32 %s29, 1
        %s171 = scalar_lea.sflag [#allocation3], %s170
        %s172 = sand.u32 %s29, 1
        %s173 = smul.addr %s172, 8
        %s174 = scalar_lea.vmem [#allocation2], %s173
        // Predicated region
        $region33: #{tpu_custom_call.1} parent=31 // pred_check
          %p175 = pneg %p42
        $region34: #{tpu_custom_call.1} parent=31 // pred_check_branch
          %177 = sbr.rel (%p175) target = $region36
        $region35: #{tpu_custom_call.1} parent=31 // pred_region
          %178 = dma.done %s171, 128
        $region36: #{tpu_custom_call.1} parent=31 // pred_fallthru
          _
        // Predicated region
        $region37: #{tpu_custom_call.1} parent=31 // pred_check
          %p179 = pneg %p63
        $region38: #{tpu_custom_call.1} parent=31 // pred_check_branch
          %181 = sbr.rel (%p179) target = $region40
        $region39: #{tpu_custom_call.1} parent=31 // pred_region
          %182 = dma.done [#allocation6], 2048
        $region40: #{tpu_custom_call.1} parent=31 // pred_fallthru
          _
        %s183 = sand.u32 %s29, 1
        %s184 = scalar_lea.sflag [#allocation3], %s183
        %s185 = sand.u32 %s29, 1
        %s186 = smul.addr %s185, 8
        %s187 = scalar_lea.vmem [#allocation2], %s186
        %p188 = pneg %p42
        %p189 = pneg %p39
        %p190 = pneg %p63
        %p191 = pneg %p60
        %p192 = pneg %p84
        %p193 = pneg %p81
        %p194 = pneg %p110
        %p195 = pneg %p107
        %s196 = sand.u32 %s97, 1
        %s197 = scalar_lea.sflag [#allocation4], %s196
        %s198 = sand.u32 %s97, 1
        %s199 = smul.addr %s198, 16
        %s200 = scalar_lea.vmem [#allocation7], %s199
        %v202 = vld [vmem:[%s174] sm:$0xff]
        %v203 = vpack.c.bf16 %v202, %v202
        %v204 = vld [vmem:[#allocation5] sm:$0xff]
        %v205 = vld [vmem:[#allocation5 + $0x8] sm:$0xff]
        %v206 = vld [vmem:[#allocation5 + $0x10] sm:$0xff]
        %v207 = vld [vmem:[#allocation5 + $0x18] sm:$0xff]
        %v208 = vld [vmem:[#allocation5 + $0x20] sm:$0xff]
        %v209 = vld [vmem:[#allocation5 + $0x28] sm:$0xff]
        %v210 = vld [vmem:[#allocation5 + $0x30] sm:$0xff]
        %v211 = vld [vmem:[#allocation5 + $0x38] sm:$0xff]
        %v212 = vld [vmem:[#allocation5 + $0x40] sm:$0xff]
        %v213 = vld [vmem:[#allocation5 + $0x48] sm:$0xff]
        %v214 = vld [vmem:[#allocation5 + $0x50] sm:$0xff]
        %v215 = vld [vmem:[#allocation5 + $0x58] sm:$0xff]
        %v216 = vld [vmem:[#allocation5 + $0x60] sm:$0xff]
        %v217 = vld [vmem:[#allocation5 + $0x68] sm:$0xff]
        %v218 = vld [vmem:[#allocation5 + $0x70] sm:$0xff]
        %v219 = vld [vmem:[#allocation5 + $0x78] sm:$0xff]
        %v220 = vld [vmem:[%s2] sm:$0x3]
        %v222 = vlaneseq
        %v223 = vshrl.u32 %v222, 7
        %v224 = vsub.s32 0, %v223
        %v225 = vrot.slane %v220, %v224
        %v226 = vlaneseq
        %v227 = vshrl.u32 %v226, 7
        %v228 = vsub.s32 1, %v227
        %v229 = vrot.slane %v220, %v228
        %v248 = vunpack.c.l.b16 %v204
        %v249 = vunpack.c.h.b16 %v204
        %v250 = vunpack.c.l.b16 %v205
        %v251 = vunpack.c.h.b16 %v205
        %v252 = vunpack.c.l.b16 %v206
        %v253 = vunpack.c.h.b16 %v206
        %v254 = vunpack.c.l.b16 %v207
        %v255 = vunpack.c.h.b16 %v207
        %v256 = vunpack.c.l.b16 %v208
        %v257 = vunpack.c.h.b16 %v208
        %v258 = vunpack.c.l.b16 %v209
        %v259 = vunpack.c.h.b16 %v209
        %v260 = vunpack.c.l.b16 %v210
        %v261 = vunpack.c.h.b16 %v210
        %v262 = vunpack.c.l.b16 %v211
        %v263 = vunpack.c.h.b16 %v211
        %v264 = vunpack.c.l.b16 %v212
        %v265 = vunpack.c.h.b16 %v212
        %v266 = vunpack.c.l.b16 %v213
        %v267 = vunpack.c.h.b16 %v213
        %v268 = vunpack.c.l.b16 %v214
        %v269 = vunpack.c.h.b16 %v214
        %v270 = vunpack.c.l.b16 %v215
        %v271 = vunpack.c.h.b16 %v215
        %v272 = vunpack.c.l.b16 %v216
        %v273 = vunpack.c.h.b16 %v216
        %v274 = vunpack.c.l.b16 %v217
        %v275 = vunpack.c.h.b16 %v217
        %v276 = vunpack.c.l.b16 %v218
        %v277 = vunpack.c.h.b16 %v218
        %v278 = vunpack.c.l.b16 %v219
        %v279 = vunpack.c.h.b16 %v219
        %v280 = vpack.c.b16 %v250, %v248
        %v281 = vpack.c.b16 %v251, %v249
        %v282 = vpack.c.b16 %v254, %v252
        %v283 = vpack.c.b16 %v255, %v253
        %v284 = vpack.c.b16 %v258, %v256
        %v285 = vpack.c.b16 %v259, %v257
        %v286 = vpack.c.b16 %v262, %v260
        %v287 = vpack.c.b16 %v263, %v261
        %v288 = vpack.c.b16 %v266, %v264
        %v289 = vpack.c.b16 %v267, %v265
        %v290 = vpack.c.b16 %v270, %v268
        %v291 = vpack.c.b16 %v271, %v269
        %v292 = vpack.c.b16 %v274, %v272
        %v293 = vpack.c.b16 %v275, %v273
        %v294 = vpack.c.b16 %v278, %v276
        %v295 = vpack.c.b16 %v279, %v277
        %312 = vmatprep.subr.bf16.mxu0 %v281
        %313 = vmatpush1.bf16.msra.mxu0 %v280
        %314 = vmatprep.subr.bf16.mxu0 %v283
        %315 = vmatpush1.bf16.msra.mxu0 %v282
        %316 = vmatprep.subr.bf16.mxu0 %v285
        %317 = vmatpush1.bf16.msra.mxu0 %v284
        %318 = vmatprep.subr.bf16.mxu0 %v287
        %319 = vmatpush1.bf16.msra.mxu0 %v286
        %320 = vmatprep.subr.bf16.mxu0 %v289
        %321 = vmatpush1.bf16.msra.mxu0 %v288
        %322 = vmatprep.subr.bf16.mxu0 %v291
        %323 = vmatpush1.bf16.msra.mxu0 %v290
        %324 = vmatprep.subr.bf16.mxu0 %v293
        %325 = vmatpush1.bf16.msra.mxu0 %v292
        %326 = vmatprep.subr.bf16.mxu0 %v295
        %327 = vmatpush1.bf16.msra.mxu0 %v294
        %328 = vmatprep.subr.bf16.mxu0 0
        %329 = vmatpush1.bf16.msra.mxu0 0
        %330 = vmatprep.subr.bf16.mxu0 0
        %331 = vmatpush1.bf16.msra.mxu0 0
        %332 = vmatprep.subr.bf16.mxu0 0
        %333 = vmatpush1.bf16.msra.mxu0 0
        %334 = vmatprep.subr.bf16.mxu0 0
        %335 = vmatpush1.bf16.msra.mxu0 0
        %336 = vmatprep.subr.bf16.mxu0 0
        %337 = vmatpush1.bf16.msra.mxu0 0
        %338 = vmatprep.subr.bf16.mxu0 0
        %339 = vmatpush1.bf16.msra.mxu0 0
        %340 = vmatprep.subr.bf16.mxu0 0
        %341 = vmatpush1.bf16.msra.mxu0 0
        %342 = vmatprep.subr.bf16.mxu0 0
        %343 = vmatpush1.bf16.msra.mxu0 0
        %344 = vmatprep.mubr.bf16.mxu0 0
        %345 = vmatmul.mubr.bf16.gmra.mrb[0].mxu0 %v203
        %v346 = vpop.f32.mrb[0].mxu0
        %v347 = vadd.f32 %v225, %v346
        %v348 = vpop.f32.mrb[0].mxu0
        %v349 = vadd.f32 %v229, %v348
        %v350 = vpop.f32.mrb[0].mxu0
        %v351 = vpop.f32.mrb[0].mxu0
        %352 = vdwg.mxu0
        %353 = vst [vmem:[%s200] sm:$0xff] %v347
        %354 = vst [vmem:[%s200 + $0x8] sm:$0xff] %v349
        %s355 = sand.u32 %s97, 1
        %s356 = scalar_lea.sflag [#allocation4], %s355
        %s357 = sand.u32 %s97, 1
        %s358 = smul.addr %s357, 16
        %s359 = scalar_lea.vmem [#allocation7], %s358
        // Predicated region
        $region41: #{tpu_custom_call.1} parent=31 // pred_check
          %p360 = pneg %p107
        $region42: #{tpu_custom_call.1} parent=31 // pred_check_branch
          %362 = sbr.rel (%p360) target = $region44
        $region43: #{tpu_custom_call.1} parent=31 // pred_region
          %s364 = ssub.s32 256, 256
          %365 = vsyncadd %s356, %s364
          %s366 = smul.addr %s21, 2
          %s367 = smul.addr %s366, 128
          %s368 = scalar_lea.hbm %s3, %s367
          %s370 = sshll.u32 %s359, 4
          %s371 = int_to_ptr.vmem [resolvable:$true] %s370
          %373 = dma.vmem_to_hbm [thread:$0]  %s371, 256, %s368, %s356
        $region44: #{tpu_custom_call.1} parent=31 // pred_fallthru
          _
      $region32: #{tpu_custom_call.1} parent=5 // pred_fallthru
        _
      %p374 = scmp.le.s32.totalorder 2, %s16
      // Predicated region
      $region45: #{tpu_custom_call.1} parent=5 // pred_check
        %p375 = pneg %p374
      $region46: #{tpu_custom_call.1} parent=5 // pred_check_branch
        %377 = sbr.rel (%p375) target = $region48
      $region47: #{tpu_custom_call.1} parent=5 // pred_region
        %s378 = ssub.s32 %s16, 2
        // Predicated region
        $region49: #{tpu_custom_call.1} parent=47 // pred_check
          %p379 = pneg %p113
        $region50: #{tpu_custom_call.1} parent=47 // pred_check_branch
          %381 = sbr.rel (%p379) target = $region52
        $region51: #{tpu_custom_call.1} parent=47 // pred_region
          %s382 = sand.u32 %s98, 1
          %s383 = scalar_lea.sflag [#allocation4], %s382
          %s384 = sand.u32 %s98, 1
          %s385 = smul.addr %s384, 16
          %s386 = scalar_lea.vmem [#allocation7], %s385
          %387 = dma.done %s383, 256
        $region52: #{tpu_custom_call.1} parent=47 // pred_fallthru
          _
      $region48: #{tpu_custom_call.1} parent=5 // pred_fallthru
        _
    $region6: #{tpu_custom_call.1} parent=1 // loop_footer
      %s20 = sadd.s32 1, %s16
    $region7: #{tpu_custom_call.1} parent=1 // loop_footer_branch
      %15 = sbr.rel target = $region3
    $region8: #{tpu_custom_call.1} parent=1 // loop_exit
      _
    %388 = vsyncpa [#allocation3], 1
    %s389 = scalar_lea.sflag [#allocation3], 1
    %390 = vsyncpa %s389, 1
    %391 = vsyncpa [#allocation6], 1
    %392 = vsyncpa [#allocation4], 1
    %s393 = scalar_lea.sflag [#allocation4], 1
    %394 = vsyncpa %s393, 1

</llo_original>
